<compile_context>
chip_gen: v6e
topology: v6e:2x2x1
jax: 0.10.0
libtpu: 0.0.40
codegen_flags: <defaults>
</compile_context>

<pallas_src>
import functools
from typing import NamedTuple

import jax
import jax.numpy as jnp
from jax.experimental import pallas as pl
from jax.experimental.pallas import tpu as pltpu


# ----------------------------------------------------------------------------
# Kernels
# ----------------------------------------------------------------------------
def _ffn_kernel_inplace(x_ref, w1_ref, b1_ref, w2_ref, b2_ref, o_ref):
    """f32-output path: accumulate directly into the resident output block."""
    k = pl.program_id(1)

    @pl.when(k == 0)
    def _init():
        # Fold the second bias into the accumulator init.
        o_ref[...] = jnp.broadcast_to(b2_ref[...], o_ref.shape)

    x = x_ref[...].astype(w1_ref.dtype)          # in-kernel cast (once per tile)
    h = jnp.dot(x, w1_ref[...], preferred_element_type=jnp.float32)
    h = jnp.maximum(h + b1_ref[...], 0.0)        # bias + ReLU in f32
    o_ref[...] += jnp.dot(h.astype(w2_ref.dtype), w2_ref[...],
                          preferred_element_type=jnp.float32)


def _ffn_kernel_scratch(x_ref, w1_ref, b1_ref, w2_ref, b2_ref, o_ref, acc_ref):
    """Sub-f32 output path: f32 VMEM accumulator, cast on writeback."""
    k = pl.program_id(1)

    @pl.when(k == 0)
    def _init():
        acc_ref[...] = jnp.broadcast_to(b2_ref[...], acc_ref.shape)

    x = x_ref[...].astype(w1_ref.dtype)
    h = jnp.dot(x, w1_ref[...], preferred_element_type=jnp.float32)
    h = jnp.maximum(h + b1_ref[...], 0.0)
    acc_ref[...] += jnp.dot(h.astype(w2_ref.dtype), w2_ref[...],
                            preferred_element_type=jnp.float32)

    @pl.when(k == pl.num_programs(1) - 1)
    def _finalize():
        o_ref[...] = acc_ref[...].astype(o_ref.dtype)


# ----------------------------------------------------------------------------
# Generation-aware configuration
# ----------------------------------------------------------------------------
def _round_up(x, m):
    return (x + m - 1) // m * m


# gen: (tm_target, tk_target, vmem_limit_bytes, mxu_pad)
_GEN_SETTINGS = {
    "v7x": (512, 512, 56 * 1024 * 1024, 256),
    "v6e": (768, 1024, 100 * 1024 * 1024, 256),
    "v5e": (256, 512, 100 * 1024 * 1024, 128),
    "unknown": (256, 512, 64 * 1024 * 1024, 128),
}


def _tpu_info():
    """Return (generation string, physical VMEM bytes) with safe fallbacks."""
    kind = ""
    try:
        kind = jax.devices()[0].device_kind.lower()
    except Exception:
        pass
    if "v7" in kind:
        gen = "v7x"
    elif "v6" in kind:
        gen = "v6e"
    elif "v5e" in kind or "v5 lite" in kind or "v5litepod" in kind:
        gen = "v5e"
    else:
        gen = "unknown"

    phys_vmem = None
    try:
        phys_vmem = int(getattr(pltpu.get_tpu_info(), "vmem_capacity_bytes"))
    except Exception:
        phys_vmem = None
    if phys_vmem is None or phys_vmem <= 0:
        phys_vmem = 64 * 1024 * 1024 if gen in ("v7x", "unknown") else 128 * 1024 * 1024
    return gen, phys_vmem


def _pick_tk(Hp, tk_target):
    """Largest multiple of 128 <= tk_target that divides Hp (Hp is %128==0)."""
    tk = min(tk_target, Hp)
    tk = (tk // 128) * 128
    while tk > 128 and Hp % tk != 0:
        tk -= 128
    return max(tk, 128)


def _shrink_tk(tk, Hp):
    """Next smaller multiple of 128 that divides Hp (or tk if none)."""
    cand = tk - 128
    while cand >= 128:
        if Hp % cand == 0:
            return cand
        cand -= 128
    return tk


def _vmem_estimate(tm, tk, Cp, x_bytes, w_bytes, out_bytes, use_scratch, n_wbuf):
    est = 2 * tm * Cp * x_bytes              # x tile (double buffered)
    est += n_wbuf * Cp * tk * w_bytes        # W1 column blocks
    est += n_wbuf * tk * Cp * w_bytes        # W2 row blocks
    est += 2 * tm * Cp * out_bytes           # output tile
    if use_scratch:
        est += tm * Cp * 4                   # f32 accumulator scratch
    est += tm * tk * 4                       # (tm, tk) f32 hidden intermediate
    est += 4 * (tk + Cp) * 4                 # bias blocks (double buffered)
    return est


def _finalize_tiles(M, cfg, x_itemsize, w_itemsize, out_itemsize, use_scratch):
    """Pick (tm, tk, Mp, n_weight_buffers) for this call, respecting VMEM."""
    row_align = 16 if w_itemsize < 4 else 8
    tm = min(cfg.tm_target, _round_up(M, row_align))
    tm = max(row_align, _round_up(tm, row_align))
    tk = cfg.tk
    budget = (cfg.vmem_limit * 9) // 10

    def fits(tm_, tk_, n_wbuf_):
        return _vmem_estimate(tm_, tk_, cfg.Cp, x_itemsize, w_itemsize,
                              out_itemsize, use_scratch, n_wbuf_) <= budget

    while not fits(tm, tk, 2):
        new_tk = _shrink_tk(tk, cfg.Hp)
        if new_tk < tk:
            tk = new_tk
        elif tm > 128:
            tm = max(row_align, _round_up(tm // 2, row_align))
        elif tm > row_align:
            tm = row_align
        else:
            break

    Mp = _round_up(M, tm)
    n_wbuf = 2
    # Single token tile => weight-DMA-bound; triple-buffer the weight streams.
    if Mp == tm and (cfg.Hp // tk) >= 3 and fits(tm, tk, 3):
        n_wbuf = 3
    return tm, tk, Mp, n_wbuf


# ----------------------------------------------------------------------------
# Parameter preparation (one-time padding + cast, outside the hot path)
# ----------------------------------------------------------------------------
class FFNConfig(NamedTuple):
    C: int
    H: int
    Cp: int
    Hp: int
    tk: int
    tm_target: int
    vmem_limit: int
    gen: str


class FFNParams(NamedTuple):
    w1: jax.Array   # (Cp, Hp) compute dtype
    b1: jax.Array   # (1, Hp)  f32
    w2: jax.Array   # (Hp, Cp) compute dtype
    b2: jax.Array   # (1, Cp)  f32
    config: FFNConfig


def prepare_params(w1, b1, w2, b2, *, compute_dtype=jnp.bfloat16):
    """Pad + cast weights once so per-call work is only the kernel itself."""
    C, H = w1.shape
    gen, phys_vmem = _tpu_info()
    tm_target, tk_target, vmem_limit, mxu_pad = _GEN_SETTINGS[gen]
    vmem_limit = min(vmem_limit, (phys_vmem * 7) // 8)

    Cp = _round_up(C, mxu_pad)
    Hp = _round_up(H, mxu_pad)
    tk = _pick_tk(Hp, tk_target)

    w1p = jnp.pad(w1, ((0, Cp - C), (0, Hp - H))).astype(compute_dtype)
    w2p = jnp.pad(w2, ((0, Hp - H), (0, Cp - C))).astype(compute_dtype)
    b1p = jnp.pad(b1.astype(jnp.float32), ((0, Hp - H),)).reshape(1, Hp)
    b2p = jnp.pad(b2.astype(jnp.float32), ((0, Cp - C),)).reshape(1, Cp)

    cfg = FFNConfig(C=C, H=H, Cp=Cp, Hp=Hp, tk=tk, tm_target=tm_target,
                    vmem_limit=int(vmem_limit), gen=gen)
    return FFNParams(w1=w1p, b1=b1p, w2=w2p, b2=b2p, config=cfg)


# ----------------------------------------------------------------------------
# pallas_call wrapper
# ----------------------------------------------------------------------------
@functools.partial(
    jax.jit,
    static_argnames=("C", "Cp", "Hp", "tm", "tk", "Mp", "vmem_limit", "n_wbuf"))
def _ffn_call(x, w1p, b1p, w2p, b2p, *, C, Cp, Hp, tm, tk, Mp, vmem_limit, n_wbuf):
    B, T, _ = x.shape
    M = B * T
    out_dtype = x.dtype

    x2d = x.reshape(M, C)
    if Mp != M or Cp != C:      # skip the padded copy for aligned shapes
        x2d = jnp.pad(x2d, ((0, Mp - M), (0, Cp - C)))

    grid = (Mp // tm, Hp // tk)   # (parallel token tiles, hidden reduction)

    w_kwargs = {} if n_wbuf <= 2 else {"pipeline_mode": pl.Buffered(n_wbuf)}
    in_specs = [
        pl.BlockSpec((tm, Cp), lambda i, k: (i, 0)),              # x tile (k-resident)
        pl.BlockSpec((Cp, tk), lambda i, k: (0, k), **w_kwargs),  # W1 column block
        pl.BlockSpec((1, tk), lambda i, k: (0, k)),               # b1 block
        pl.BlockSpec((tk, Cp), lambda i, k: (k, 0), **w_kwargs),  # W2 row block
        pl.BlockSpec((1, Cp), lambda i, k: (0, 0)),               # b2 (constant)
    ]
    out_spec = pl.BlockSpec((tm, Cp), lambda i, k: (i, 0))

    # Weights are re-streamed once per token tile.
    n_i = Mp // tm
    w_bytes = jnp.dtype(w1p.dtype).itemsize
    cost = pl.CostEstimate(
        flops=4 * Mp * Cp * Hp,   # two matmuls: 2*M*C*H each
        transcendentals=0,
        bytes_accessed=(
            Mp * Cp * jnp.dtype(x.dtype).itemsize
            + n_i * 2 * Cp * Hp * w_bytes
            + n_i * (Hp + Cp) * 4
            + Mp * Cp * jnp.dtype(out_dtype).itemsize
        ),
    )

    if out_dtype == jnp.float32:
        kernel = _ffn_kernel_inplace
        scratch_shapes = []
    else:
        kernel = _ffn_kernel_scratch
        scratch_shapes = [pltpu.VMEM((tm, Cp), jnp.float32)]

    out2d = pl.pallas_call(
        kernel,
        out_shape=jax.ShapeDtypeStruct((Mp, Cp), out_dtype),
        grid_spec=pltpu.PrefetchScalarGridSpec(
            num_scalar_prefetch=0,
            grid=grid,
            in_specs=in_specs,
            out_specs=out_spec,
            scratch_shapes=scratch_shapes,
        ),
        compiler_params=pltpu.CompilerParams(
            dimension_semantics=("parallel", "arbitrary"),
            vmem_limit_bytes=vmem_limit,
        ),
        cost_estimate=cost,
    )(x2d, w1p, b1p, w2p, b2p)

    return out2d[:M, :C].reshape(B, T, C)


def feed_forward(x, params: FFNParams):
    """Eval-mode FeedForward: Linear(C,4C) -> ReLU -> Linear(4C,C) -> Dropout(id).

    x: (B, T, C) array; params: output of prepare_params().
    """
    cfg = params.config
    B, T, C = x.shape
    assert C == cfg.C, f"expected C={cfg.C}, got {C}"
    M = B * T

    x_itemsize = jnp.dtype(x.dtype).itemsize
    w_itemsize = jnp.dtype(params.w1.dtype).itemsize
    out_itemsize = x_itemsize
    use_scratch = x.dtype != jnp.float32

    tm, tk, Mp, n_wbuf = _finalize_tiles(
        M, cfg, x_itemsize, w_itemsize, out_itemsize, use_scratch)

    # TODO(synk): train-mode dropout (pltpu.prng_seed + prng_random_bits mask)
    # is not implemented; this matches nn.Dropout in eval()/inference mode.
    return _ffn_call(x, params.w1, params.b1, params.w2, params.b2,
                     C=C, Cp=cfg.Cp, Hp=cfg.Hp, tm=tm, tk=tk, Mp=Mp,
                     vmem_limit=cfg.vmem_limit, n_wbuf=n_wbuf)


# ----------------------------------------------------------------------------
# Init + test
# ----------------------------------------------------------------------------
def init_params(key, n_embd, dtype=jnp.float32):
    """Deterministic init mimicking nn.Linear's U(-1/sqrt(in), 1/sqrt(in))."""
    h = 4 * n_embd
    k1, k2, k3, k4 = jax.random.split(key, 4)
    bound1 = 1.0 / (n_embd ** 0.5)
    bound2 = 1.0 / (h ** 0.5)
    w1 = jax.random.uniform(k1, (n_embd, h), dtype, -bound1, bound1)
    b1 = jax.random.uniform(k2, (h,), dtype, -bound1, bound1)
    w2 = jax.random.uniform(k3, (h, n_embd), dtype, -bound2, bound2)
    b2 = jax.random.uniform(k4, (n_embd,), dtype, -bound2, bound2)
    return w1, b1, w2, b2


if __name__ == "__main__":
    n_embd = 32          # -> hidden = 128
    dropout = 0.1        # inactive in eval mode
    B, T = 2, 8

    key = jax.random.PRNGKey(0)
    kx, kp = jax.random.split(key)
    x = jax.random.normal(kx, (B, T, n_embd), jnp.float32)
    w1, b1, w2, b2 = init_params(kp, n_embd)

    ref = jnp.maximum(x.reshape(-1, n_embd) @ w1 + b1, 0.0) @ w2 + b2
    ref = ref.reshape(B, T, n_embd)

    # Default fast path: bf16 MXU operands, f32 accumulation, f32 output.
    params_bf16 = prepare_params(w1, b1, w2, b2)           # compute_dtype=bf16
    out = jax.block_until_ready(feed_forward(x, params_bf16))
    assert out.shape == (B, T, n_embd) and out.dtype == x.dtype
    assert jnp.allclose(out, ref, atol=5e-2, rtol=5e-2)

    # Full-f32 operand path (tight tolerance).
    params_f32 = prepare_params(w1, b1, w2, b2, compute_dtype=jnp.float32)
    out_f32 = jax.block_until_ready(feed_forward(x, params_f32))
    assert jnp.allclose(out_f32, ref, atol=1e-5, rtol=1e-5)

    # bf16 activations exercise the scratch-accumulator (sub-f32 output) kernel.
    out_bf16 = jax.block_until_ready(feed_forward(x.astype(jnp.bfloat16), params_bf16))
    assert out_bf16.dtype == jnp.bfloat16
    assert jnp.allclose(out_bf16.astype(jnp.float32), ref, atol=7e-2, rtol=7e-2)

    print("KERNEL_OK")
</pallas_src>

<mosaic_0001>
module attributes {stable_mosaic.version = 11 : i64} {
  func.func @_ffn_kernel_inplace(%arg0: i32, %arg1: i32, %arg2: memref<16x128xf32, #tpu.memory_space<vmem>>, %arg3: memref<128x128xbf16, #tpu.memory_space<vmem>>, %arg4: memref<1x128xf32, #tpu.memory_space<vmem>>, %arg5: memref<128x128xbf16, #tpu.memory_space<vmem>>, %arg6: memref<1x128xf32, #tpu.memory_space<vmem>>, %arg7: memref<16x128xf32, #tpu.memory_space<vmem>>) attributes {dimension_semantics = [#tpu.dimension_semantics<parallel>, #tpu.dimension_semantics<arbitrary>], iteration_bounds = array<i64: 1, 1>, scalar_prefetch = 0 : i64, scratch_operands = 0 : i64, tpu.core_type = #tpu.core_type<tc>, window_params = [{transform_indices = @transform_0, window_bounds = array<i64: 16, 128>}, {transform_indices = @transform_1, window_bounds = array<i64: 128, 128>}, {transform_indices = @transform_2, window_bounds = array<i64: 1, 128>}, {transform_indices = @transform_3, window_bounds = array<i64: 128, 128>}, {pipeline_mode = #tpu.pipeline_mode<synchronous>, transform_indices = @transform_4, window_bounds = array<i64: 1, 128>}, {transform_indices = @transform_5, window_bounds = array<i64: 16, 128>}]} {
    %c0_i32 = arith.constant 0 : i32
    %0 = arith.cmpi eq, %arg1, %c0_i32 : i32
    %1 = arith.extui %0 : i1 to i32
    %c0_i32_0 = arith.constant 0 : i32
    %2 = arith.cmpi ne, %1, %c0_i32_0 : i32
    scf.if %2 {
      %c0_14 = arith.constant 0 : index
      %c0_15 = arith.constant 0 : index
      %18 = vector.load %arg6[%c0_14, %c0_15] : memref<1x128xf32, #tpu.memory_space<vmem>>, vector<1x128xf32>
      %19 = vector.shape_cast %18 : vector<1x128xf32> to vector<1x128xf32>
      %20 = vector.broadcast %19 : vector<1x128xf32> to vector<16x128xf32>
      %c0_16 = arith.constant 0 : index
      %c0_17 = arith.constant 0 : index
      %21 = vector.load %arg7[%c0_16, %c0_17] : memref<16x128xf32, #tpu.memory_space<vmem>>, vector<16x128xf32>
      tpu.vector_store %arg7[%c0_16, %c0_17], %20 {strides = array<i32>} : memref<16x128xf32, #tpu.memory_space<vmem>>, vector<16x128xf32>,
    } else {
    }
    %c0 = arith.constant 0 : index
    %c0_1 = arith.constant 0 : index
    %3 = vector.load %arg2[%c0, %c0_1] : memref<16x128xf32, #tpu.memory_space<vmem>>, vector<16x128xf32>
    %4 = arith.truncf %3 : vector<16x128xf32> to vector<16x128xbf16>
    %c0_2 = arith.constant 0 : index
    %c0_3 = arith.constant 0 : index
    %5 = vector.load %arg3[%c0_2, %c0_3] : memref<128x128xbf16, #tpu.memory_space<vmem>>, vector<128x128xbf16>
    %cst = arith.constant dense<0.000000e+00> : vector<16x128xf32>
    %6 = tpu.matmul %4, %5, %cst {dimension_numbers = #tpu.dot_dimension_numbers<[1], [0], [0], [1], [0, 0, 1, 1], [], []>} : vector<16x128xbf16>, vector<128x128xbf16>, vector<16x128xf32> -> vector<16x128xf32>
    %c0_4 = arith.constant 0 : index
    %c0_5 = arith.constant 0 : index
    %7 = vector.load %arg4[%c0_4, %c0_5] : memref<1x128xf32, #tpu.memory_space<vmem>>, vector<1x128xf32>
    %8 = vector.broadcast %7 : vector<1x128xf32> to vector<16x128xf32>
    %9 = arith.addf %6, %8 : vector<16x128xf32>
    %cst_6 = arith.constant 0.000000e+00 : f32
    %10 = vector.broadcast %cst_6 : f32 to vector<16x128xf32>
    %11 = arith.maximumf %9, %10 : vector<16x128xf32>
    %c0_7 = arith.constant 0 : index
    %c0_8 = arith.constant 0 : index
    %12 = vector.load %arg7[%c0_7, %c0_8] : memref<16x128xf32, #tpu.memory_space<vmem>>, vector<16x128xf32>
    %13 = arith.truncf %11 : vector<16x128xf32> to vector<16x128xbf16>
    %c0_9 = arith.constant 0 : index
    %c0_10 = arith.constant 0 : index
    %14 = vector.load %arg5[%c0_9, %c0_10] : memref<128x128xbf16, #tpu.memory_space<vmem>>, vector<128x128xbf16>
    %cst_11 = arith.constant dense<0.000000e+00> : vector<16x128xf32>
    %15 = tpu.matmul %13, %14, %cst_11 {dimension_numbers = #tpu.dot_dimension_numbers<[1], [0], [0], [1], [0, 0, 1, 1], [], []>} : vector<16x128xbf16>, vector<128x128xbf16>, vector<16x128xf32> -> vector<16x128xf32>
    %16 = arith.addf %12, %15 : vector<16x128xf32>
    %c0_12 = arith.constant 0 : index
    %c0_13 = arith.constant 0 : index
    %17 = vector.load %arg7[%c0_12, %c0_13] : memref<16x128xf32, #tpu.memory_space<vmem>>, vector<16x128xf32>
    tpu.vector_store %arg7[%c0_12, %c0_13], %16 {strides = array<i32>} : memref<16x128xf32, #tpu.memory_space<vmem>>, vector<16x128xf32>,
    return
  }
  func.func @transform_0(%arg0: i32, %arg1: i32) -> (i32, i32) {
    %c0_i32 = arith.constant 0 : i32
    %c0_i32_0 = arith.constant 0 : i32
    return %arg0, %c0_i32 : i32, i32
  }
  func.func @transform_1(%arg0: i32, %arg1: i32) -> (i32, i32) {
    %c0_i32 = arith.constant 0 : i32
    %c0_i32_0 = arith.constant 0 : i32
    return %c0_i32, %arg1 : i32, i32
  }
  func.func @transform_2(%arg0: i32, %arg1: i32) -> (i32, i32) {
    %c0_i32 = arith.constant 0 : i32
    %c0_i32_0 = arith.constant 0 : i32
    return %c0_i32, %arg1 : i32, i32
  }
  func.func @transform_3(%arg0: i32, %arg1: i32) -> (i32, i32) {
    %c0_i32 = arith.constant 0 : i32
    %c0_i32_0 = arith.constant 0 : i32
    return %arg1, %c0_i32 : i32, i32
  }
  func.func @transform_4(%arg0: i32, %arg1: i32) -> (i32, i32) {
    %c0_i32 = arith.constant 0 : i32
    %c0_i32_0 = arith.constant 0 : i32
    %c0_i32_1 = arith.constant 0 : i32
    return %c0_i32, %c0_i32_0 : i32, i32
  }
  func.func @transform_5(%arg0: i32, %arg1: i32) -> (i32, i32) {
    %c0_i32 = arith.constant 0 : i32
    %c0_i32_0 = arith.constant 0 : i32
    return %arg0, %c0_i32 : i32, i32
  }
}

</mosaic_0001>

<llo_original>
// kernel: _ffn_call.1
$region0: #{_ffn_call.1}
  #allocation0 [shape = 'u32[]', space=smem, size = 0x4, offset = 0x4, fixed_abs, tag = 'smem constant byte address 0x4 - core index']
  #allocation1 [shape = 'u32[144,128]{1,0:T(1,128)}', space=vmem, size = 0x12000, scoped, tag = 'internal scratch']
  %s0 = inlined_call_operand.vmem [shape: f32[16,128], index: 0, kind: input, shape index: {}]
  %s1 = inlined_call_operand.hbm [shape: bf16[128,128], index: 1, kind: input, shape index: {}]
  %s2 = inlined_call_operand.vmem [shape: f32[1,128], index: 2, kind: input, shape index: {}]
  %s3 = inlined_call_operand.hbm [shape: bf16[128,128], index: 3, kind: input, shape index: {}]
  %s4 = inlined_call_operand.vmem [shape: f32[1,128], index: 4, kind: input, shape index: {}]
  %s5 = inlined_call_operand.vmem [shape: f32[16,128], index: 5, kind: output, shape index: {}]
  %s6 = sld [smem:[#allocation0]]
  $region42: #{_ffn_call.1} parent=0
    _
  %s8 = ssub.s32 1, %s6
  %s9 = scalar_select 0, %s8, %s6
  $region1: #{_ffn_call.1} parent=0
    #allocation2 [shape = 'u8[32768]{0}', space=vmem, size = 0x8000, scoped, tag = 'input window, operand 1, single buffered']
    #allocation3 [shape = 's32[1]{0}', space=sflag, size = 0x4, scoped, tag = 'scoped memory for _ffn_call.1']
    #allocation4 [shape = 'u8[32768]{0}', space=vmem, size = 0x8000, scoped, tag = 'input window, operand 3, single buffered']
    #allocation5 [shape = 's32[1]{0}', space=sflag, size = 0x4, scoped, tag = 'scoped memory for _ffn_call.1']
    %10 = vsyncpa [#allocation3], 0
    %11 = vsyncpa [#allocation5], 0
    // Predicated region
    $region2: #{_ffn_call.1} parent=1 // pred_check
      _
    $region3: #{_ffn_call.1} parent=1 // pred_check_branch
      %13 = sbr.rel (0) target = $region5
    $region4: #{_ffn_call.1} parent=1 // pred_region
      _
    $region5: #{_ffn_call.1} parent=1 // pred_fallthru
      _
    // Predicated region
    $region6: #{_ffn_call.1} parent=1 // pred_check
      _
    $region7: #{_ffn_call.1} parent=1 // pred_check_branch
      %15 = sbr.rel (0) target = $region9
    $region8: #{_ffn_call.1} parent=1 // pred_region
      %s17 = ssub.s32 1024, 1024
      %18 = vsyncadd [#allocation3], %s17
      %s19 = sshll.u32 [#allocation2], 4
      %s20 = int_to_ptr.vmem [resolvable:$true] %s19
      %25 = dma.hbm_to_vmem [thread:$0]  %s1, 1024, %s20, [#allocation3], 64, 64, 4
    $region9: #{_ffn_call.1} parent=1 // pred_fallthru
      _
    // Predicated region
    $region10: #{_ffn_call.1} parent=1 // pred_check
      _
    $region11: #{_ffn_call.1} parent=1 // pred_check_branch
      %27 = sbr.rel (0) target = $region13
    $region12: #{_ffn_call.1} parent=1 // pred_region
      _
    $region13: #{_ffn_call.1} parent=1 // pred_fallthru
      _
    // Predicated region
    $region14: #{_ffn_call.1} parent=1 // pred_check
      _
    $region15: #{_ffn_call.1} parent=1 // pred_check_branch
      %29 = sbr.rel (0) target = $region17
    $region16: #{_ffn_call.1} parent=1 // pred_region
      %s31 = ssub.s32 1024, 1024
      %32 = vsyncadd [#allocation5], %s31
      %s33 = sshll.u32 [#allocation4], 4
      %s34 = int_to_ptr.vmem [resolvable:$true] %s33
      %39 = dma.hbm_to_vmem [thread:$0]  %s3, 1024, %s34, [#allocation5], 64, 64, 4
    $region17: #{_ffn_call.1} parent=1 // pred_fallthru
      _
    // Predicated region
    $region18: #{_ffn_call.1} parent=1 // pred_check
      _
    $region19: #{_ffn_call.1} parent=1 // pred_check_branch
      %41 = sbr.rel (0) target = $region21
    $region20: #{_ffn_call.1} parent=1 // pred_region
      _
    $region21: #{_ffn_call.1} parent=1 // pred_fallthru
      _
    // Predicated region
    $region22: #{_ffn_call.1} parent=1 // pred_check
      _
    $region23: #{_ffn_call.1} parent=1 // pred_check_branch
      %43 = sbr.rel (0) target = $region25
    $region24: #{_ffn_call.1} parent=1 // pred_region
      %44 = dma.done [#allocation3], 1024
    $region25: #{_ffn_call.1} parent=1 // pred_fallthru
      _
    // Predicated region
    $region26: #{_ffn_call.1} parent=1 // pred_check
      _
    $region27: #{_ffn_call.1} parent=1 // pred_check_branch
      %46 = sbr.rel (0) target = $region29
    $region28: #{_ffn_call.1} parent=1 // pred_region
      %47 = dma.done [#allocation5], 1024
    $region29: #{_ffn_call.1} parent=1 // pred_fallthru
      _
    %p49 = scmp.eq.s32.totalorder 0, 0
    // Predicated region
    $region30: #{_ffn_call.1} parent=1 // pred_check
      %p50 = pneg %p49
    $region31: #{_ffn_call.1} parent=1 // pred_check_branch
      %52 = sbr.rel (%p50) target = $region33
    $region32: #{_ffn_call.1} parent=1 // pred_region
      %v53 = vld [vmem:[%s4] sm:$0x1]
      %v55 = vlaneseq
      %v56 = vshrl.u32 %v55, 7
      %v57 = vsub.s32 0, %v56
      %v58 = vrot.slane %v53, %v57
      %60 = vst [vmem:[%s5] sm:$0xff] %v58
      %61 = vst [vmem:[%s5 + $0x8] sm:$0xff] %v58
    $region33: #{_ffn_call.1} parent=1 // pred_fallthru
      _
    %v62 = vld [vmem:[%s0] sm:$0xff]
    %v63 = vld [vmem:[%s0 + $0x8] sm:$0xff]
    %v64 = vpack.c.bf16 %v63, %v62
    %v65 = vld [vmem:[#allocation2] sm:$0xf]
    %v66 = vld [vmem:[#allocation2 + $0x4] sm:$0xf]
    %v67 = vld [vmem:[#allocation2 + $0x8] sm:$0xf]
    %v68 = vld [vmem:[#allocation2 + $0xc] sm:$0xf]
    %v69 = vld [vmem:[#allocation2 + $0x10] sm:$0xf]
    %v70 = vld [vmem:[#allocation2 + $0x14] sm:$0xf]
    %v71 = vld [vmem:[#allocation2 + $0x18] sm:$0xf]
    %v72 = vld [vmem:[#allocation2 + $0x1c] sm:$0xf]
    %v73 = vld [vmem:[#allocation2 + $0x20] sm:$0xf]
    %v74 = vld [vmem:[#allocation2 + $0x24] sm:$0xf]
    %v75 = vld [vmem:[#allocation2 + $0x28] sm:$0xf]
    %v76 = vld [vmem:[#allocation2 + $0x2c] sm:$0xf]
    %v77 = vld [vmem:[#allocation2 + $0x30] sm:$0xf]
    %v78 = vld [vmem:[#allocation2 + $0x34] sm:$0xf]
    %v79 = vld [vmem:[#allocation2 + $0x38] sm:$0xf]
    %v80 = vld [vmem:[#allocation2 + $0x3c] sm:$0xf]
    %v81 = vld [vmem:[%s2] sm:$0x1]
    %v83 = vlaneseq
    %v84 = vshrl.u32 %v83, 7
    %v85 = vsub.s32 0, %v84
    %v86 = vrot.slane %v81, %v85
    %v104 = vunpack.c.l.b16 %v65
    %v105 = vunpack.c.l.b16 %v66
    %v106 = vunpack.c.l.b16 %v67
    %v107 = vunpack.c.l.b16 %v68
    %v108 = vunpack.c.l.b16 %v69
    %v109 = vunpack.c.l.b16 %v70
    %v110 = vunpack.c.l.b16 %v71
    %v111 = vunpack.c.l.b16 %v72
    %v112 = vunpack.c.l.b16 %v73
    %v113 = vunpack.c.l.b16 %v74
    %v114 = vunpack.c.l.b16 %v75
    %v115 = vunpack.c.l.b16 %v76
    %v116 = vunpack.c.l.b16 %v77
    %v117 = vunpack.c.l.b16 %v78
    %v118 = vunpack.c.l.b16 %v79
    %v119 = vunpack.c.l.b16 %v80
    %v120 = vpack.c.b16 %v105, %v104
    %v121 = vpack.c.b16 %v107, %v106
    %v122 = vpack.c.b16 %v109, %v108
    %v123 = vpack.c.b16 %v111, %v110
    %v124 = vpack.c.b16 %v113, %v112
    %v125 = vpack.c.b16 %v115, %v114
    %v126 = vpack.c.b16 %v117, %v116
    %v127 = vpack.c.b16 %v119, %v118
    %136 = vmatprep.subr.bf16.mxu0 0
    %137 = vmatpush1.bf16.msra.mxu0 %v127
    %138 = vmatprep.subr.bf16.mxu0 0
    %139 = vmatpush1.bf16.msra.mxu0 %v126
    %140 = vmatprep.subr.bf16.mxu0 0
    %141 = vmatpush1.bf16.msra.mxu0 %v125
    %142 = vmatprep.subr.bf16.mxu0 0
    %143 = vmatpush1.bf16.msra.mxu0 %v124
    %144 = vmatprep.subr.bf16.mxu0 0
    %145 = vmatpush1.bf16.msra.mxu0 %v123
    %146 = vmatprep.subr.bf16.mxu0 0
    %147 = vmatpush1.bf16.msra.mxu0 %v122
    %148 = vmatprep.subr.bf16.mxu0 0
    %149 = vmatpush1.bf16.msra.mxu0 %v121
    %150 = vmatprep.subr.bf16.mxu0 0
    %151 = vmatpush1.bf16.msra.mxu0 %v120
    %152 = vmatprep.subr.bf16.mxu0 0
    %153 = vmatpush2.bf16.msra.mxu0 0
    %154 = vmatprep.subr.bf16.mxu0 0
    %155 = vmatpush2.bf16.msra.mxu0 0
    %156 = vmatprep.subr.bf16.mxu0 0
    %157 = vmatpush2.bf16.msra.mxu0 0
    %158 = vmatprep.subr.bf16.mxu0 0
    %159 = vmatpush2.bf16.msra.mxu0 0
    %160 = vmatprep.subr.bf16.mxu0 0
    %161 = vmatpush2.bf16.msra.mxu0 0
    %162 = vmatprep.subr.bf16.mxu0 0
    %163 = vmatpush2.bf16.msra.mxu0 0
    %164 = vmatprep.subr.bf16.mxu0 0
    %165 = vmatpush2.bf16.msra.mxu0 0
    %166 = vmatprep.subr.bf16.mxu0 0
    %167 = vmatpush2.bf16.msra.mxu0 0
    %168 = vmatprep.mubr.bf16.mxu0 0
    %169 = vmatmul.mubr.bf16.gmra.mxu0 %v64
    %v170 = vpop.f32.mrf.mxu0
    %v171 = vadd.f32 %v86, %v170
    %v172 = vpop.f32.mrf.mxu0
    %v173 = vpop.f32.mrf.mxu0
    %v174 = vadd.f32 %v86, %v173
    %v175 = vpop.f32.mrf.mxu0
    %176 = vdwg.mxu0
    %v177 = vmax.f32 %v171, 0.0
    %v178 = vmax.f32 %v174, 0.0
    %v179 = vld [vmem:[%s5] sm:$0xff]
    %v180 = vld [vmem:[%s5 + $0x8] sm:$0xff]
    %v181 = vpack.c.bf16 %v178, %v177
    %v182 = vld [vmem:[#allocation4] sm:$0xf]
    %v183 = vld [vmem:[#allocation4 + $0x4] sm:$0xf]
    %v184 = vld [vmem:[#allocation4 + $0x8] sm:$0xf]
    %v185 = vld [vmem:[#allocation4 + $0xc] sm:$0xf]
    %v186 = vld [vmem:[#allocation4 + $0x10] sm:$0xf]
    %v187 = vld [vmem:[#allocation4 + $0x14] sm:$0xf]
    %v188 = vld [vmem:[#allocation4 + $0x18] sm:$0xf]
    %v189 = vld [vmem:[#allocation4 + $0x1c] sm:$0xf]
    %v190 = vld [vmem:[#allocation4 + $0x20] sm:$0xf]
    %v191 = vld [vmem:[#allocation4 + $0x24] sm:$0xf]
    %v192 = vld [vmem:[#allocation4 + $0x28] sm:$0xf]
    %v193 = vld [vmem:[#allocation4 + $0x2c] sm:$0xf]
    %v194 = vld [vmem:[#allocation4 + $0x30] sm:$0xf]
    %v195 = vld [vmem:[#allocation4 + $0x34] sm:$0xf]
    %v196 = vld [vmem:[#allocation4 + $0x38] sm:$0xf]
    %v197 = vld [vmem:[#allocation4 + $0x3c] sm:$0xf]
    %v214 = vunpack.c.l.b16 %v182
    %v215 = vunpack.c.l.b16 %v183
    %v216 = vunpack.c.l.b16 %v184
    %v217 = vunpack.c.l.b16 %v185
    %v218 = vunpack.c.l.b16 %v186
    %v219 = vunpack.c.l.b16 %v187
    %v220 = vunpack.c.l.b16 %v188
    %v221 = vunpack.c.l.b16 %v189
    %v222 = vunpack.c.l.b16 %v190
    %v223 = vunpack.c.l.b16 %v191
    %v224 = vunpack.c.l.b16 %v192
    %v225 = vunpack.c.l.b16 %v193
    %v226 = vunpack.c.l.b16 %v194
    %v227 = vunpack.c.l.b16 %v195
    %v228 = vunpack.c.l.b16 %v196
    %v229 = vunpack.c.l.b16 %v197
    %v230 = vpack.c.b16 %v215, %v214
    %v231 = vpack.c.b16 %v217, %v216
    %v232 = vpack.c.b16 %v219, %v218
    %v233 = vpack.c.b16 %v221, %v220
    %v234 = vpack.c.b16 %v223, %v222
    %v235 = vpack.c.b16 %v225, %v224
    %v236 = vpack.c.b16 %v227, %v226
    %v237 = vpack.c.b16 %v229, %v228
    %246 = vmatprep.subr.bf16.mxu0 0
    %247 = vmatpush1.bf16.msra.mxu0 %v237
    %248 = vmatprep.subr.bf16.mxu0 0
    %249 = vmatpush1.bf16.msra.mxu0 %v236
    %250 = vmatprep.subr.bf16.mxu0 0
    %251 = vmatpush1.bf16.msra.mxu0 %v235
    %252 = vmatprep.subr.bf16.mxu0 0
    %253 = vmatpush1.bf16.msra.mxu0 %v234
    %254 = vmatprep.subr.bf16.mxu0 0
    %255 = vmatpush1.bf16.msra.mxu0 %v233
    %256 = vmatprep.subr.bf16.mxu0 0
    %257 = vmatpush1.bf16.msra.mxu0 %v232
    %258 = vmatprep.subr.bf16.mxu0 0
    %259 = vmatpush1.bf16.msra.mxu0 %v231
    %260 = vmatprep.subr.bf16.mxu0 0
    %261 = vmatpush1.bf16.msra.mxu0 %v230
    %262 = vmatprep.subr.bf16.mxu0 0
    %263 = vmatpush2.bf16.msra.mxu0 0
    %264 = vmatprep.subr.bf16.mxu0 0
    %265 = vmatpush2.bf16.msra.mxu0 0
    %266 = vmatprep.subr.bf16.mxu0 0
    %267 = vmatpush2.bf16.msra.mxu0 0
    %268 = vmatprep.subr.bf16.mxu0 0
    %269 = vmatpush2.bf16.msra.mxu0 0
    %270 = vmatprep.subr.bf16.mxu0 0
    %271 = vmatpush2.bf16.msra.mxu0 0
    %272 = vmatprep.subr.bf16.mxu0 0
    %273 = vmatpush2.bf16.msra.mxu0 0
    %274 = vmatprep.subr.bf16.mxu0 0
    %275 = vmatpush2.bf16.msra.mxu0 0
    %276 = vmatprep.subr.bf16.mxu0 0
    %277 = vmatpush2.bf16.msra.mxu0 0
    %278 = vmatprep.mubr.bf16.mxu0 0
    %279 = vmatmul.mubr.bf16.gmra.mxu0 %v181
    %v280 = vpop.f32.mrf.mxu0
    %v281 = vadd.f32 0.0, %v280
    %v282 = vpop.f32.mrf.mxu0
    %v283 = vpop.f32.mrf.mxu0
    %v284 = vadd.f32 0.0, %v283
    %v285 = vpop.f32.mrf.mxu0
    %286 = vdwg.mxu0
    %v287 = vadd.f32 %v179, %v281
    %v288 = vadd.f32 %v180, %v284
    %289 = vst [vmem:[%s5] sm:$0xff] %v287
    %290 = vst [vmem:[%s5 + $0x8] sm:$0xff] %v288
    // Predicated region
    $region34: #{_ffn_call.1} parent=1 // pred_check
      _
    $region35: #{_ffn_call.1} parent=1 // pred_check_branch
      %292 = sbr.rel (0) target = $region37
    $region36: #{_ffn_call.1} parent=1 // pred_region
      _
    $region37: #{_ffn_call.1} parent=1 // pred_fallthru
      _
    // Predicated region
    $region38: #{_ffn_call.1} parent=1 // pred_check
      _
    $region39: #{_ffn_call.1} parent=1 // pred_check_branch
      %294 = sbr.rel (0) target = $region41
    $region40: #{_ffn_call.1} parent=1 // pred_region
      _
    $region41: #{_ffn_call.1} parent=1 // pred_fallthru
      _
    %295 = vsyncpa [#allocation3], 1
    %296 = vsyncpa [#allocation5], 1

</llo_original>
